<compile_context>
chip_gen: v5e
topology: v5e:2x2
jax: 0.10.0
libtpu: 0.0.40
codegen_flags: <defaults>
</compile_context>

<pallas_src>
import jax
import jax.numpy as jnp
from jax.experimental import pallas as pl
from jax.experimental.pallas import tpu as pltpu

_LANES = 128
_SUBLANES = 8


def _cdiv(a, b):
    return -(-a // b)


def _round_up(a, m):
    return _cdiv(a, m) * m


def _round_down(a, m):
    return (a // m) * m


def _tpu_budgets():
    """Return (per-step input payload bytes, vmem_limit_bytes) per TPU generation."""
    kind = ""
    try:
        kind = jax.devices()[0].device_kind.lower()
    except Exception:
        pass
    if any(tag in kind for tag in ("v2", "v3", "v4", "v5", "v6")):
        # 128 MiB VMEM parts: larger streaming tiles amortize per-step overhead.
        return 24 * 1024 * 1024, 64 * 1024 * 1024
    # v7x (64 MiB VMEM / TC) or unknown: stay conservative.
    return 12 * 1024 * 1024, 40 * 1024 * 1024


def _cube_sum(x):
    """sum(x**3) of an f32 tile with ~4 independent accumulation chains for ILP."""
    c = (x * x) * x
    rows, d = c.shape
    if rows % 32 == 0 and rows >= 32:
        # Split the row axis into 4 independent reductions (pure regrouping of
        # whole 8-sublane row blocks), then combine.
        c = jnp.sum(c.reshape(4, rows // 4, d), axis=1)
    return jnp.sum(c)


def _make_kernel(weights, batch, tile_rows, needs_mask):
    """Kernel over one batch-tile of every component array in this group."""

    def kernel(*refs):
        o_ref = refs[-1]
        in_refs = refs[:-1]
        if needs_mask:
            valid_rows = batch - pl.program_id(0) * tile_rows
            row_ids = jax.lax.broadcasted_iota(jnp.int32, (tile_rows, 1), 0)
            mask = row_ids < valid_rows
        total = jnp.float32(0.0)
        for ref, w in zip(in_refs, weights):
            x = ref[...].astype(jnp.float32)      # native-dtype stream, f32 math
            if needs_mask:
                x = jnp.where(mask, x, 0.0)       # 0**3 == 0: padding is exact
            total = total + jnp.float32(w) * _cube_sum(x)
        o_ref[...] = jnp.full((1, _SUBLANES, _LANES), total, dtype=jnp.float32)

    return kernel


def _wn3_group_sum(arrays, weights, tile_budget_bytes, vmem_limit_bytes):
    """Weighted sum_i weights[i] * sum(arrays[i]**3) for arrays sharing a batch dim."""
    batch = arrays[0].shape[0]
    arrays = [x.reshape(batch, -1) for x in arrays]
    dims = [x.shape[1] for x in arrays]
    row_bytes = sum(x.shape[1] * x.dtype.itemsize for x in arrays)

    # Tile the batch axis only; last block dim = full D (legal for any D).
    tile_rows = _round_down(max(tile_budget_bytes // max(row_bytes, 1), 8), 8)
    if batch >= 4 * _SUBLANES:
        # Keep >= ~4 grid steps so both v7x TensorCores get work and the
        # DMA/compute pipeline overlaps (also minimizes boundary-block waste).
        tile_rows = min(tile_rows, _round_up(_cdiv(batch, 4), 8))
    if tile_rows >= batch:
        tile_rows = batch                          # single full-extent block
    grid = _cdiv(batch, tile_rows)
    needs_mask = (batch % tile_rows) != 0

    kernel = _make_kernel(tuple(weights), batch, tile_rows, needs_mask)

    in_specs = [pl.BlockSpec((tile_rows, d), lambda i: (i, 0)) for d in dims]
    out_specs = pl.BlockSpec((1, _SUBLANES, _LANES), lambda i: (i, 0, 0))

    total_elems = sum(batch * d for d in dims)
    bytes_in = sum(batch * d * x.dtype.itemsize for d, x in zip(dims, arrays))
    bytes_out = grid * _SUBLANES * _LANES * 4
    cost = pl.CostEstimate(flops=5 * total_elems, transcendentals=0,
                           bytes_accessed=bytes_in + bytes_out)

    partials = pl.pallas_call(
        kernel,
        out_shape=jax.ShapeDtypeStruct((grid, _SUBLANES, _LANES), jnp.float32),
        grid_spec=pltpu.PrefetchScalarGridSpec(
            num_scalar_prefetch=0,
            grid=(grid,),
            in_specs=in_specs,
            out_specs=out_specs),
        compiler_params=pltpu.CompilerParams(
            dimension_semantics=("parallel",),
            vmem_limit_bytes=vmem_limit_bytes),
        cost_estimate=cost,
    )(*arrays)

    # Each step wrote its scalar partial broadcast over its (8,128) block.
    return jnp.sum(partials[:, 0, 0])


def wn3_forward(factors, weight: float, *, tile_budget_bytes=None):
    """JAX/Pallas equivalent of wN3.forward(factors).

    factors: sequence of (h, r, t) triples; each entry is an array with the
    batch dimension first (typically (B, D)).  Arrays keep their native dtype
    on the way into the kernel; math is done in f32.
    """
    payload_budget, vmem_limit = _tpu_budgets()
    if tile_budget_bytes is None:
        tile_budget_bytes = payload_budget

    # Fuse every component that shares a batch dimension into one pallas_call
    # (in the common case: exactly one call for all factors).
    groups = {}
    for h, r, t in factors:
        for x, w in ((h, 2.0), (r, 0.5), (t, 2.0)):
            key = x.shape[0]
            if key not in groups:
                groups[key] = ([], [])
            groups[key][0].append(x)
            groups[key][1].append(w)

    norm = jnp.float32(0.0)
    for _, (arrs, ws) in groups.items():
        norm = norm + _wn3_group_sum(arrs, ws, tile_budget_bytes, vmem_limit)

    # Matches the PyTorch reference exactly: divide by the *last* factor's h batch.
    batch = factors[-1][0].shape[0]
    return jnp.float32(weight) * norm / batch


def wn3_reference(factors, weight: float):
    norm = jnp.float32(0.0)
    h = None
    for factor in factors:
        h, r, t = factor
        norm = norm + 2.0 * jnp.sum(h.astype(jnp.float32) ** 3)
        norm = norm + 2.0 * jnp.sum(t.astype(jnp.float32) ** 3)
        norm = norm + 0.5 * jnp.sum(r.astype(jnp.float32) ** 3)
    return jnp.float32(weight) * norm / h.shape[0]


if __name__ == "__main__":
    weight = 0.1

    # Test 1: two factors of (h, r, t) embeddings, small shapes (batch=8, rank=32),
    # f32 native dtype.  Everything fuses into a single pallas_call.
    B, D = 8, 32
    keys = jax.random.split(jax.random.PRNGKey(0), 6)
    factors = [
        (jax.random.normal(keys[0], (B, D), dtype=jnp.float32),
         jax.random.normal(keys[1], (B, D), dtype=jnp.float32),
         jax.random.normal(keys[2], (B, D), dtype=jnp.float32)),
        (jax.random.normal(keys[3], (B, D), dtype=jnp.float32),
         jax.random.normal(keys[4], (B, D), dtype=jnp.float32),
         jax.random.normal(keys[5], (B, D), dtype=jnp.float32)),
    ]
    out = jax.block_until_ready(wn3_forward(factors, weight))
    ref = jax.block_until_ready(wn3_reference(factors, weight))
    assert jnp.allclose(out, ref, rtol=2e-4, atol=1e-3), (out, ref)

    # Test 2: ragged shapes + tiny tile budget to force a multi-step "parallel"
    # grid with a masked boundary block (B=36 not a multiple of the 16-row tile).
    B2, D2 = 36, 50
    keys2 = jax.random.split(jax.random.PRNGKey(1), 3)
    factors2 = [
        (jax.random.normal(keys2[0], (B2, D2), dtype=jnp.float32),
         jax.random.normal(keys2[1], (B2, D2), dtype=jnp.float32),
         jax.random.normal(keys2[2], (B2, D2), dtype=jnp.float32)),
    ]
    out2 = jax.block_until_ready(
        wn3_forward(factors2, weight, tile_budget_bytes=9600))
    ref2 = jax.block_until_ready(wn3_reference(factors2, weight))
    assert jnp.allclose(out2, ref2, rtol=2e-4, atol=1e-3), (out2, ref2)

    # Test 3: bf16 inputs streamed in native dtype, cast to f32 inside the kernel.
    B3, D3 = 16, 64
    keys3 = jax.random.split(jax.random.PRNGKey(2), 3)
    factors3 = [
        (jax.random.normal(keys3[0], (B3, D3), dtype=jnp.float32).astype(jnp.bfloat16),
         jax.random.normal(keys3[1], (B3, D3), dtype=jnp.float32).astype(jnp.bfloat16),
         jax.random.normal(keys3[2], (B3, D3), dtype=jnp.float32).astype(jnp.bfloat16)),
    ]
    out3 = jax.block_until_ready(wn3_forward(factors3, weight))
    ref3 = jax.block_until_ready(wn3_reference(factors3, weight))
    assert jnp.allclose(out3, ref3, rtol=2e-4, atol=1e-3), (out3, ref3)

    print("KERNEL_OK")
</pallas_src>

<mosaic_0001>
module attributes {stable_mosaic.version = 11 : i64} {
  func.func @kernel(%arg0: i32, %arg1: memref<8x32xf32, #tpu.memory_space<vmem>>, %arg2: memref<8x32xf32, #tpu.memory_space<vmem>>, %arg3: memref<8x32xf32, #tpu.memory_space<vmem>>, %arg4: memref<8x32xf32, #tpu.memory_space<vmem>>, %arg5: memref<8x32xf32, #tpu.memory_space<vmem>>, %arg6: memref<8x32xf32, #tpu.memory_space<vmem>>, %arg7: memref<1x8x128xf32, #tpu.memory_space<vmem>>) attributes {dimension_semantics = [#tpu.dimension_semantics<parallel>], iteration_bounds = array<i64: 1>, scalar_prefetch = 0 : i64, scratch_operands = 0 : i64, tpu.core_type = #tpu.core_type<tc>, window_params = [{transform_indices = @transform_0, window_bounds = array<i64: 8, 32>}, {transform_indices = @transform_1, window_bounds = array<i64: 8, 32>}, {transform_indices = @transform_2, window_bounds = array<i64: 8, 32>}, {transform_indices = @transform_3, window_bounds = array<i64: 8, 32>}, {transform_indices = @transform_4, window_bounds = array<i64: 8, 32>}, {transform_indices = @transform_5, window_bounds = array<i64: 8, 32>}, {transform_indices = @transform_6, window_bounds = array<i64: 1, 8, 128>}]} {
    %c0 = arith.constant 0 : index
    %c0_0 = arith.constant 0 : index
    %0 = vector.load %arg1[%c0, %c0_0] : memref<8x32xf32, #tpu.memory_space<vmem>>, vector<8x32xf32>
    %1 = arith.mulf %0, %0 : vector<8x32xf32>
    %2 = arith.mulf %1, %0 : vector<8x32xf32>
    %3 = vector.shape_cast %2 : vector<8x32xf32> to vector<1x8x32xf32>
    %cst = arith.constant dense<0.000000e+00> : vector<1xf32>
    %4 = vector.multi_reduction <add>, %3, %cst [1, 2] : vector<1x8x32xf32> to vector<1xf32>
    %5 = vector.shape_cast %4 : vector<1xf32> to vector<1x1x1xf32>
    %6 = vector.extract %5[0, 0, 0] : f32 from vector<1x1x1xf32>
    %cst_1 = arith.constant 2.000000e+00 : f32
    %7 = arith.mulf %cst_1, %6 : f32
    %cst_2 = arith.constant 0.000000e+00 : f32
    %8 = arith.addf %cst_2, %7 : f32
    %c0_3 = arith.constant 0 : index
    %c0_4 = arith.constant 0 : index
    %9 = vector.load %arg2[%c0_3, %c0_4] : memref<8x32xf32, #tpu.memory_space<vmem>>, vector<8x32xf32>
    %10 = arith.mulf %9, %9 : vector<8x32xf32>
    %11 = arith.mulf %10, %9 : vector<8x32xf32>
    %12 = vector.shape_cast %11 : vector<8x32xf32> to vector<1x8x32xf32>
    %cst_5 = arith.constant dense<0.000000e+00> : vector<1xf32>
    %13 = vector.multi_reduction <add>, %12, %cst_5 [1, 2] : vector<1x8x32xf32> to vector<1xf32>
    %14 = vector.shape_cast %13 : vector<1xf32> to vector<1x1x1xf32>
    %15 = vector.extract %14[0, 0, 0] : f32 from vector<1x1x1xf32>
    %cst_6 = arith.constant 5.000000e-01 : f32
    %16 = arith.mulf %cst_6, %15 : f32
    %17 = arith.addf %8, %16 : f32
    %c0_7 = arith.constant 0 : index
    %c0_8 = arith.constant 0 : index
    %18 = vector.load %arg3[%c0_7, %c0_8] : memref<8x32xf32, #tpu.memory_space<vmem>>, vector<8x32xf32>
    %19 = arith.mulf %18, %18 : vector<8x32xf32>
    %20 = arith.mulf %19, %18 : vector<8x32xf32>
    %21 = vector.shape_cast %20 : vector<8x32xf32> to vector<1x8x32xf32>
    %cst_9 = arith.constant dense<0.000000e+00> : vector<1xf32>
    %22 = vector.multi_reduction <add>, %21, %cst_9 [1, 2] : vector<1x8x32xf32> to vector<1xf32>
    %23 = vector.shape_cast %22 : vector<1xf32> to vector<1x1x1xf32>
    %24 = vector.extract %23[0, 0, 0] : f32 from vector<1x1x1xf32>
    %cst_10 = arith.constant 2.000000e+00 : f32
    %25 = arith.mulf %cst_10, %24 : f32
    %26 = arith.addf %17, %25 : f32
    %c0_11 = arith.constant 0 : index
    %c0_12 = arith.constant 0 : index
    %27 = vector.load %arg4[%c0_11, %c0_12] : memref<8x32xf32, #tpu.memory_space<vmem>>, vector<8x32xf32>
    %28 = arith.mulf %27, %27 : vector<8x32xf32>
    %29 = arith.mulf %28, %27 : vector<8x32xf32>
    %30 = vector.shape_cast %29 : vector<8x32xf32> to vector<1x8x32xf32>
    %cst_13 = arith.constant dense<0.000000e+00> : vector<1xf32>
    %31 = vector.multi_reduction <add>, %30, %cst_13 [1, 2] : vector<1x8x32xf32> to vector<1xf32>
    %32 = vector.shape_cast %31 : vector<1xf32> to vector<1x1x1xf32>
    %33 = vector.extract %32[0, 0, 0] : f32 from vector<1x1x1xf32>
    %cst_14 = arith.constant 2.000000e+00 : f32
    %34 = arith.mulf %cst_14, %33 : f32
    %35 = arith.addf %26, %34 : f32
    %c0_15 = arith.constant 0 : index
    %c0_16 = arith.constant 0 : index
    %36 = vector.load %arg5[%c0_15, %c0_16] : memref<8x32xf32, #tpu.memory_space<vmem>>, vector<8x32xf32>
    %37 = arith.mulf %36, %36 : vector<8x32xf32>
    %38 = arith.mulf %37, %36 : vector<8x32xf32>
    %39 = vector.shape_cast %38 : vector<8x32xf32> to vector<1x8x32xf32>
    %cst_17 = arith.constant dense<0.000000e+00> : vector<1xf32>
    %40 = vector.multi_reduction <add>, %39, %cst_17 [1, 2] : vector<1x8x32xf32> to vector<1xf32>
    %41 = vector.shape_cast %40 : vector<1xf32> to vector<1x1x1xf32>
    %42 = vector.extract %41[0, 0, 0] : f32 from vector<1x1x1xf32>
    %cst_18 = arith.constant 5.000000e-01 : f32
    %43 = arith.mulf %cst_18, %42 : f32
    %44 = arith.addf %35, %43 : f32
    %c0_19 = arith.constant 0 : index
    %c0_20 = arith.constant 0 : index
    %45 = vector.load %arg6[%c0_19, %c0_20] : memref<8x32xf32, #tpu.memory_space<vmem>>, vector<8x32xf32>
    %46 = arith.mulf %45, %45 : vector<8x32xf32>
    %47 = arith.mulf %46, %45 : vector<8x32xf32>
    %48 = vector.shape_cast %47 : vector<8x32xf32> to vector<1x8x32xf32>
    %cst_21 = arith.constant dense<0.000000e+00> : vector<1xf32>
    %49 = vector.multi_reduction <add>, %48, %cst_21 [1, 2] : vector<1x8x32xf32> to vector<1xf32>
    %50 = vector.shape_cast %49 : vector<1xf32> to vector<1x1x1xf32>
    %51 = vector.extract %50[0, 0, 0] : f32 from vector<1x1x1xf32>
    %cst_22 = arith.constant 2.000000e+00 : f32
    %52 = arith.mulf %cst_22, %51 : f32
    %53 = arith.addf %44, %52 : f32
    %54 = vector.broadcast %53 : f32 to vector<1x8x128xf32>
    %c0_23 = arith.constant 0 : index
    %c0_24 = arith.constant 0 : index
    %c0_25 = arith.constant 0 : index
    %55 = vector.load %arg7[%c0_23, %c0_24, %c0_25] : memref<1x8x128xf32, #tpu.memory_space<vmem>>, vector<1x8x128xf32>
    tpu.vector_store %arg7[%c0_23, %c0_24, %c0_25], %54 {strides = array<i32>} : memref<1x8x128xf32, #tpu.memory_space<vmem>>, vector<1x8x128xf32>,
    return
  }
  func.func @transform_0(%arg0: i32) -> (i32, i32) {
    %c0_i32 = arith.constant 0 : i32
    %c0_i32_0 = arith.constant 0 : i32
    return %arg0, %c0_i32 : i32, i32
  }
  func.func @transform_1(%arg0: i32) -> (i32, i32) {
    %c0_i32 = arith.constant 0 : i32
    %c0_i32_0 = arith.constant 0 : i32
    return %arg0, %c0_i32 : i32, i32
  }
  func.func @transform_2(%arg0: i32) -> (i32, i32) {
    %c0_i32 = arith.constant 0 : i32
    %c0_i32_0 = arith.constant 0 : i32
    return %arg0, %c0_i32 : i32, i32
  }
  func.func @transform_3(%arg0: i32) -> (i32, i32) {
    %c0_i32 = arith.constant 0 : i32
    %c0_i32_0 = arith.constant 0 : i32
    return %arg0, %c0_i32 : i32, i32
  }
  func.func @transform_4(%arg0: i32) -> (i32, i32) {
    %c0_i32 = arith.constant 0 : i32
    %c0_i32_0 = arith.constant 0 : i32
    return %arg0, %c0_i32 : i32, i32
  }
  func.func @transform_5(%arg0: i32) -> (i32, i32) {
    %c0_i32 = arith.constant 0 : i32
    %c0_i32_0 = arith.constant 0 : i32
    return %arg0, %c0_i32 : i32, i32
  }
  func.func @transform_6(%arg0: i32) -> (i32, i32, i32) {
    %c0_i32 = arith.constant 0 : i32
    %c0_i32_0 = arith.constant 0 : i32
    %c0_i32_1 = arith.constant 0 : i32
    return %arg0, %c0_i32, %c0_i32_0 : i32, i32, i32
  }
}

</mosaic_0001>

<llo_original>
// kernel: tpu_custom_call.1
$region0: #{tpu_custom_call.1}
  #allocation0 [shape = 'u32[]', space=smem, size = 0x4, offset = 0x4, fixed_abs, tag = 'smem constant byte address 0x4 - core index']
  #allocation1 [shape = 'u32[72,128]{1,0:T(1,128)}', space=vmem, size = 0x9000, scoped, tag = 'internal scratch']
  %s0 = inlined_call_operand.hbm [shape: f32[8,32], index: 0, kind: input, shape index: {}]
  %s1 = inlined_call_operand.hbm [shape: f32[8,32], index: 1, kind: input, shape index: {}]
  %s2 = inlined_call_operand.hbm [shape: f32[8,32], index: 2, kind: input, shape index: {}]
  %s3 = inlined_call_operand.hbm [shape: f32[8,32], index: 3, kind: input, shape index: {}]
  %s4 = inlined_call_operand.hbm [shape: f32[8,32], index: 4, kind: input, shape index: {}]
  %s5 = inlined_call_operand.hbm [shape: f32[8,32], index: 5, kind: input, shape index: {}]
  %s6 = inlined_call_operand.hbm [shape: f32[1,8,128], index: 6, kind: output, shape index: {}]
  %s7 = sld [smem:[#allocation0]]
  $region58: #{tpu_custom_call.1} parent=0
    _
  %s9 = ssub.s32 1, %s7
  %s10 = scalar_select 0, %s9, %s7
  $region1: #{tpu_custom_call.1} parent=0
    #allocation2 [shape = 'u8[4096]{0}', space=vmem, size = 0x1000, scoped, tag = 'input window, operand 0, single buffered']
    #allocation3 [shape = 's32[1]{0}', space=sflag, size = 0x4, scoped, tag = 'scoped memory for tpu_custom_call.1']
    #allocation4 [shape = 's32[1]{0}', space=sflag, size = 0x4, scoped, tag = 'scoped memory for tpu_custom_call.1']
    #allocation5 [shape = 'u8[4096]{0}', space=vmem, size = 0x1000, scoped, tag = 'input window, operand 1, single buffered']
    #allocation6 [shape = 's32[1]{0}', space=sflag, size = 0x4, scoped, tag = 'scoped memory for tpu_custom_call.1']
    #allocation7 [shape = 'u8[4096]{0}', space=vmem, size = 0x1000, scoped, tag = 'input window, operand 2, single buffered']
    #allocation8 [shape = 'u8[4096]{0}', space=vmem, size = 0x1000, scoped, tag = 'input window, operand 3, single buffered']
    #allocation9 [shape = 's32[1]{0}', space=sflag, size = 0x4, scoped, tag = 'scoped memory for tpu_custom_call.1']
    #allocation10 [shape = 'u8[4096]{0}', space=vmem, size = 0x1000, scoped, tag = 'input window, operand 4, single buffered']
    #allocation11 [shape = 'u8[4096]{0}', space=vmem, size = 0x1000, scoped, tag = 'input window, operand 5, single buffered']
    #allocation12 [shape = 's32[1]{0}', space=sflag, size = 0x4, scoped, tag = 'scoped memory for tpu_custom_call.1']
    #allocation13 [shape = 'u8[4096]{0}', space=vmem, size = 0x1000, scoped, tag = 'output window, operand 0, single buffered']
    %11 = vsyncpa [#allocation3], 0
    %12 = vsyncpa [#allocation6], 0
    %13 = vsyncpa [#allocation9], 0
    %14 = vsyncpa [#allocation12], 0
    %15 = vsyncpa [#allocation4], 0
    // Predicated region
    $region2: #{tpu_custom_call.1} parent=1 // pred_check
      _
    $region3: #{tpu_custom_call.1} parent=1 // pred_check_branch
      %17 = sbr.rel (0) target = $region5
    $region4: #{tpu_custom_call.1} parent=1 // pred_region
      %19 = vsyncadd [#allocation3], 0
      %s21 = sshll.u32 %s0, 4
      %s22 = int_to_ptr.hbm [resolvable:$true] %s21
      %s23 = sshll.u32 [#allocation2], 4
      %s24 = int_to_ptr.vmem [resolvable:$true] %s23
      %26 = dma.hbm_to_vmem [thread:$0]  %s22, 128, %s24, [#allocation3]
    $region5: #{tpu_custom_call.1} parent=1 // pred_fallthru
      _
    // Predicated region
    $region6: #{tpu_custom_call.1} parent=1 // pred_check
      _
    $region7: #{tpu_custom_call.1} parent=1 // pred_check_branch
      %28 = sbr.rel (0) target = $region9
    $region8: #{tpu_custom_call.1} parent=1 // pred_region
      %30 = vsyncadd [#allocation6], 0
      %s32 = sshll.u32 %s1, 4
      %s33 = int_to_ptr.hbm [resolvable:$true] %s32
      %s34 = sshll.u32 [#allocation5], 4
      %s35 = int_to_ptr.vmem [resolvable:$true] %s34
      %37 = dma.hbm_to_vmem [thread:$0]  %s33, 128, %s35, [#allocation6]
    $region9: #{tpu_custom_call.1} parent=1 // pred_fallthru
      _
    // Predicated region
    $region10: #{tpu_custom_call.1} parent=1 // pred_check
      _
    $region11: #{tpu_custom_call.1} parent=1 // pred_check_branch
      %39 = sbr.rel (0) target = $region13
    $region12: #{tpu_custom_call.1} parent=1 // pred_region
      %41 = vsyncadd [#allocation6], 0
      %s43 = sshll.u32 %s2, 4
      %s44 = int_to_ptr.hbm [resolvable:$true] %s43
      %s45 = sshll.u32 [#allocation7], 4
      %s46 = int_to_ptr.vmem [resolvable:$true] %s45
      %48 = dma.hbm_to_vmem [thread:$0]  %s44, 128, %s46, [#allocation6]
    $region13: #{tpu_custom_call.1} parent=1 // pred_fallthru
      _
    // Predicated region
    $region14: #{tpu_custom_call.1} parent=1 // pred_check
      _
    $region15: #{tpu_custom_call.1} parent=1 // pred_check_branch
      %50 = sbr.rel (0) target = $region17
    $region16: #{tpu_custom_call.1} parent=1 // pred_region
      %52 = vsyncadd [#allocation9], 0
      %s54 = sshll.u32 %s3, 4
      %s55 = int_to_ptr.hbm [resolvable:$true] %s54
      %s56 = sshll.u32 [#allocation8], 4
      %s57 = int_to_ptr.vmem [resolvable:$true] %s56
      %59 = dma.hbm_to_vmem [thread:$0]  %s55, 128, %s57, [#allocation9]
    $region17: #{tpu_custom_call.1} parent=1 // pred_fallthru
      _
    // Predicated region
    $region18: #{tpu_custom_call.1} parent=1 // pred_check
      _
    $region19: #{tpu_custom_call.1} parent=1 // pred_check_branch
      %61 = sbr.rel (0) target = $region21
    $region20: #{tpu_custom_call.1} parent=1 // pred_region
      %63 = vsyncadd [#allocation9], 0
      %s65 = sshll.u32 %s4, 4
      %s66 = int_to_ptr.hbm [resolvable:$true] %s65
      %s67 = sshll.u32 [#allocation10], 4
      %s68 = int_to_ptr.vmem [resolvable:$true] %s67
      %70 = dma.hbm_to_vmem [thread:$0]  %s66, 128, %s68, [#allocation9]
    $region21: #{tpu_custom_call.1} parent=1 // pred_fallthru
      _
    // Predicated region
    $region22: #{tpu_custom_call.1} parent=1 // pred_check
      _
    $region23: #{tpu_custom_call.1} parent=1 // pred_check_branch
      %72 = sbr.rel (0) target = $region25
    $region24: #{tpu_custom_call.1} parent=1 // pred_region
      %74 = vsyncadd [#allocation12], 0
      %s76 = sshll.u32 %s5, 4
      %s77 = int_to_ptr.hbm [resolvable:$true] %s76
      %s78 = sshll.u32 [#allocation11], 4
      %s79 = int_to_ptr.vmem [resolvable:$true] %s78
      %81 = dma.hbm_to_vmem [thread:$0]  %s77, 128, %s79, [#allocation12]
    $region25: #{tpu_custom_call.1} parent=1 // pred_fallthru
      _
    // Predicated region
    $region26: #{tpu_custom_call.1} parent=1 // pred_check
      _
    $region27: #{tpu_custom_call.1} parent=1 // pred_check_branch
      %83 = sbr.rel (0) target = $region29
    $region28: #{tpu_custom_call.1} parent=1 // pred_region
      %85 = dma.done [#allocation3], 128
    $region29: #{tpu_custom_call.1} parent=1 // pred_fallthru
      _
    // Predicated region
    $region30: #{tpu_custom_call.1} parent=1 // pred_check
      _
    $region31: #{tpu_custom_call.1} parent=1 // pred_check_branch
      %87 = sbr.rel (0) target = $region33
    $region32: #{tpu_custom_call.1} parent=1 // pred_region
      %89 = dma.done [#allocation6], 128
    $region33: #{tpu_custom_call.1} parent=1 // pred_fallthru
      _
    // Predicated region
    $region34: #{tpu_custom_call.1} parent=1 // pred_check
      _
    $region35: #{tpu_custom_call.1} parent=1 // pred_check_branch
      %91 = sbr.rel (0) target = $region37
    $region36: #{tpu_custom_call.1} parent=1 // pred_region
      %93 = dma.done [#allocation6], 128
    $region37: #{tpu_custom_call.1} parent=1 // pred_fallthru
      _
    // Predicated region
    $region38: #{tpu_custom_call.1} parent=1 // pred_check
      _
    $region39: #{tpu_custom_call.1} parent=1 // pred_check_branch
      %95 = sbr.rel (0) target = $region41
    $region40: #{tpu_custom_call.1} parent=1 // pred_region
      %97 = dma.done [#allocation9], 128
    $region41: #{tpu_custom_call.1} parent=1 // pred_fallthru
      _
    // Predicated region
    $region42: #{tpu_custom_call.1} parent=1 // pred_check
      _
    $region43: #{tpu_custom_call.1} parent=1 // pred_check_branch
      %99 = sbr.rel (0) target = $region45
    $region44: #{tpu_custom_call.1} parent=1 // pred_region
      %101 = dma.done [#allocation9], 128
    $region45: #{tpu_custom_call.1} parent=1 // pred_fallthru
      _
    // Predicated region
    $region46: #{tpu_custom_call.1} parent=1 // pred_check
      _
    $region47: #{tpu_custom_call.1} parent=1 // pred_check_branch
      %103 = sbr.rel (0) target = $region49
    $region48: #{tpu_custom_call.1} parent=1 // pred_region
      %105 = dma.done [#allocation12], 128
    $region49: #{tpu_custom_call.1} parent=1 // pred_fallthru
      _
    %v106 = vld [vmem:[#allocation2] sm:$0xff]
    %v107 = vmul.f32 %v106, %v106
    %v108 = vmul.f32 %v107, %v106
    %vm109 = vcmask 261120
    %v110 = vsel %vm109, %v108, 0.0
    %111 = vadd.xlane.f32.xlu0 %v110
    %v112 = vpop.xlane.xlu0 %111
    %v113 = vrot.slane %v112, 4
    %v114 = vadd.f32 %v112, %v113
    %v115 = vrot.slane %v114, 2
    %v116 = vadd.f32 %v114, %v115
    %v117 = vrot.slane %v116, 1
    %v118 = vadd.f32 %v116, %v117
    %s119 = vtos %v118
    %s120 = smul.f32 %s119, 2.0
    %s121 = sadd.f32 %s120, 0.0
    %v122 = vld [vmem:[#allocation5] sm:$0xff]
    %v123 = vmul.f32 %v122, %v122
    %v124 = vmul.f32 %v123, %v122
    %v125 = vsel %vm109, %v124, 0.0
    %126 = vadd.xlane.f32.xlu0 %v125
    %v127 = vpop.xlane.xlu0 %126
    %v128 = vrot.slane %v127, 4
    %v129 = vadd.f32 %v127, %v128
    %v130 = vrot.slane %v129, 2
    %v131 = vadd.f32 %v129, %v130
    %v132 = vrot.slane %v131, 1
    %v133 = vadd.f32 %v131, %v132
    %s134 = vtos %v133
    %s135 = smul.f32 %s134, 0.5
    %s136 = sadd.f32 %s121, %s135
    %v137 = vld [vmem:[#allocation7] sm:$0xff]
    %v138 = vmul.f32 %v137, %v137
    %v139 = vmul.f32 %v138, %v137
    %v140 = vsel %vm109, %v139, 0.0
    %141 = vadd.xlane.f32.xlu0 %v140
    %v142 = vpop.xlane.xlu0 %141
    %v143 = vrot.slane %v142, 4
    %v144 = vadd.f32 %v142, %v143
    %v145 = vrot.slane %v144, 2
    %v146 = vadd.f32 %v144, %v145
    %v147 = vrot.slane %v146, 1
    %v148 = vadd.f32 %v146, %v147
    %s149 = vtos %v148
    %s150 = smul.f32 %s149, 2.0
    %s151 = sadd.f32 %s136, %s150
    %v152 = vld [vmem:[#allocation8] sm:$0xff]
    %v153 = vmul.f32 %v152, %v152
    %v154 = vmul.f32 %v153, %v152
    %v155 = vsel %vm109, %v154, 0.0
    %156 = vadd.xlane.f32.xlu0 %v155
    %v157 = vpop.xlane.xlu0 %156
    %v158 = vrot.slane %v157, 4
    %v159 = vadd.f32 %v157, %v158
    %v160 = vrot.slane %v159, 2
    %v161 = vadd.f32 %v159, %v160
    %v162 = vrot.slane %v161, 1
    %v163 = vadd.f32 %v161, %v162
    %s164 = vtos %v163
    %s165 = smul.f32 %s164, 2.0
    %s166 = sadd.f32 %s151, %s165
    %v167 = vld [vmem:[#allocation10] sm:$0xff]
    %v168 = vmul.f32 %v167, %v167
    %v169 = vmul.f32 %v168, %v167
    %v170 = vsel %vm109, %v169, 0.0
    %171 = vadd.xlane.f32.xlu0 %v170
    %v172 = vpop.xlane.xlu0 %171
    %v173 = vrot.slane %v172, 4
    %v174 = vadd.f32 %v172, %v173
    %v175 = vrot.slane %v174, 2
    %v176 = vadd.f32 %v174, %v175
    %v177 = vrot.slane %v176, 1
    %v178 = vadd.f32 %v176, %v177
    %s179 = vtos %v178
    %s180 = smul.f32 %s179, 0.5
    %s181 = sadd.f32 %s166, %s180
    %v182 = vld [vmem:[#allocation11] sm:$0xff]
    %v183 = vmul.f32 %v182, %v182
    %v184 = vmul.f32 %v183, %v182
    %v185 = vsel %vm109, %v184, 0.0
    %186 = vadd.xlane.f32.xlu0 %v185
    %v187 = vpop.xlane.xlu0 %186
    %v188 = vrot.slane %v187, 4
    %v189 = vadd.f32 %v187, %v188
    %v190 = vrot.slane %v189, 2
    %v191 = vadd.f32 %v189, %v190
    %v192 = vrot.slane %v191, 1
    %v193 = vadd.f32 %v191, %v192
    %s194 = vtos %v193
    %s195 = smul.f32 %s194, 2.0
    %s196 = sadd.f32 %s181, %s195
    %v197 = vstv %s196
    %198 = vst [vmem:[#allocation13] sm:$0xff] %v197
    // Predicated region
    $region50: #{tpu_custom_call.1} parent=1 // pred_check
      _
    $region51: #{tpu_custom_call.1} parent=1 // pred_check_branch
      %200 = sbr.rel (0) target = $region53
    $region52: #{tpu_custom_call.1} parent=1 // pred_region
      %202 = vsyncadd [#allocation4], 0
      %s204 = sshll.u32 [#allocation13], 4
      %s205 = int_to_ptr.vmem [resolvable:$true] %s204
      %s206 = sshll.u32 %s6, 4
      %s207 = int_to_ptr.hbm [resolvable:$true] %s206
      %209 = dma.vmem_to_hbm [thread:$0]  %s205, 128, %s207, [#allocation4]
    $region53: #{tpu_custom_call.1} parent=1 // pred_fallthru
      _
    // Predicated region
    $region54: #{tpu_custom_call.1} parent=1 // pred_check
      _
    $region55: #{tpu_custom_call.1} parent=1 // pred_check_branch
      %211 = sbr.rel (0) target = $region57
    $region56: #{tpu_custom_call.1} parent=1 // pred_region
      %213 = dma.done [#allocation4], 128
    $region57: #{tpu_custom_call.1} parent=1 // pred_fallthru
      _
    %214 = vsyncpa [#allocation3], 1
    %215 = vsyncpa [#allocation6], 1
    %216 = vsyncpa [#allocation9], 1
    %217 = vsyncpa [#allocation12], 1
    %218 = vsyncpa [#allocation4], 1

</llo_original>
